<compile_context>
chip_gen: v7x
topology: tpu7x:2x2x1
jax: 0.10.0
libtpu: 0.0.40
codegen_flags: <defaults>
</compile_context>

<pallas_src>
import math

import jax
import jax.numpy as jnp
from jax.experimental import pallas as pl
from jax.experimental.pallas import tpu as pltpu

IN = 5      # linear1 input features
OUT = 8     # linear1 output features
TB = 8      # batch-tile rows per grid step (f32 sublane multiple)


def model_kernel(x_ref, w_ref, b_ref, out_ref):
    x = x_ref[...]                    # (TB, IN)  f32
    w = w_ref[...]                    # (IN, OUT) f32 (pre-transposed weight)

    # Linear: v0 = x @ W^T + b, as an unrolled VPU scalar-vector accumulation
    # (IN = 5 static steps) -- no MXU involvement.
    v0 = b_ref[...]                   # (1, OUT), broadcasts up to (TB, OUT)
    for i in range(IN):               # static Python unroll
        v0 = v0 + x[:, i:i + 1] * w[i:i + 1, :]

    v1 = jax.nn.sigmoid(v0)           # (TB, OUT)

    # Folded tail: softmax(relu(v1 + 0.7*v1) + 1.5) == softmax(1.7 * v1).
    # 1.7*v1 is bounded in (0, 1.7), so exp() is safe without max-subtraction.
    e = jnp.exp(1.7 * v1)
    denom = jnp.sum(e, axis=-1, keepdims=True)
    v6 = e * pl.reciprocal(denom, approx=True)

    # Single packed output block -> one output DMA per tile (not three).
    out_ref[:, 0:OUT] = v6
    out_ref[:, OUT:2 * OUT] = v1
    out_ref[:, 2 * OUT:3 * OUT] = v0


def prepare_params(weight, bias):
    """One-time parameter prep (hoisted out of the per-call path).
    PyTorch Linear stores weight as (OUT, IN); the kernel wants (IN, OUT)."""
    w_t = jnp.asarray(weight, jnp.float32).T            # (IN, OUT)
    b2d = jnp.asarray(bias, jnp.float32).reshape(1, OUT)  # (1, OUT)
    return w_t, b2d


def model_forward(x, w_t, b2d):
    """x: (B, IN) f32; w_t: (IN, OUT); b2d: (1, OUT). Returns (v6, v1, v0)."""
    x = jnp.asarray(x, jnp.float32)
    B = x.shape[0]
    Bp = ((B + TB - 1) // TB) * TB
    if Bp != B:                        # pad batch to a sublane multiple
        x = jnp.pad(x, ((0, Bp - B), (0, 0)))

    packed = pl.pallas_call(
        model_kernel,
        out_shape=jax.ShapeDtypeStruct((Bp, 3 * OUT), jnp.float32),
        grid=(Bp // TB,),
        in_specs=[
            pl.BlockSpec((TB, IN), lambda i: (i, 0)),     # x tile
            pl.BlockSpec((IN, OUT), lambda i: (0, 0)),    # weight (resident)
            pl.BlockSpec((1, OUT), lambda i: (0, 0)),     # bias   (resident)
        ],
        out_specs=pl.BlockSpec((TB, 3 * OUT), lambda i: (i, 0)),
        compiler_params=pltpu.CompilerParams(
            dimension_semantics=("parallel",)),
    )(x, w_t, b2d)

    packed = packed[:B]                # drop padded rows (view-level slicing)
    v6 = packed[:, 0:OUT]
    v1 = packed[:, OUT:2 * OUT]
    v0 = packed[:, 2 * OUT:3 * OUT]
    return v6, v1, v0


def _reference(x, weight, bias):
    """Pure-JAX transcription of the original (unfolded) PyTorch forward."""
    v0 = x @ weight.T + bias
    v1 = jax.nn.sigmoid(v0)
    v2 = v1 * 0.7
    v3 = v1 + v2
    v4 = jnp.maximum(v3, 0.0)
    v5 = v4 + 1.5
    v6 = jax.nn.softmax(v5, axis=-1)
    return v6, v1, v0


if __name__ == "__main__":
    key = jax.random.PRNGKey(0)
    kx, kw, kb = jax.random.split(key, 3)

    # Parameters at the module's scale (PyTorch Linear init range).
    bound = 1.0 / math.sqrt(IN)
    weight = jax.random.uniform(kw, (OUT, IN), jnp.float32, -bound, bound)
    bias = jax.random.uniform(kb, (OUT,), jnp.float32, -bound, bound)
    w_t, b2d = prepare_params(weight, bias)     # hoisted, done once

    # Small batched input (16 rows -> 2 grid tiles); also exercise the
    # module's original (1, 5) shape through the padding path.
    x_batched = jax.random.normal(kx, (16, IN), dtype=jnp.float32)
    x_single = x_batched[:1]

    for x0 in (x_batched, x_single):
        v6, v1, v0 = jax.block_until_ready(model_forward(x0, w_t, b2d))
        r6, r1, r0 = _reference(x0, weight, bias)
        assert jnp.allclose(v0, r0, atol=1e-5), "v0 mismatch"
        assert jnp.allclose(v1, r1, atol=1e-5), "v1 mismatch"
        # v6 uses the EUP approximate reciprocal (~2^-12 relative error), so
        # its check is slightly looser than the exact-division reference.
        assert jnp.allclose(v6, r6, rtol=2e-3, atol=2e-3), "v6 mismatch"

    print("KERNEL_OK")
</pallas_src>

<mosaic_0001>
module attributes {stable_mosaic.version = 11 : i64} {
  func.func @model_kernel(%arg0: i32, %arg1: memref<8x5xf32, #tpu.memory_space<vmem>>, %arg2: memref<5x8xf32, #tpu.memory_space<vmem>>, %arg3: memref<1x8xf32, #tpu.memory_space<vmem>>, %arg4: memref<8x24xf32, #tpu.memory_space<vmem>>) attributes {dimension_semantics = [#tpu.dimension_semantics<parallel>], iteration_bounds = array<i64: 2>, scalar_prefetch = 0 : i64, scratch_operands = 0 : i64, tpu.core_type = #tpu.core_type<tc>, window_params = [{transform_indices = @transform_0, window_bounds = array<i64: 8, 5>}, {pipeline_mode = #tpu.pipeline_mode<synchronous>, transform_indices = @transform_1, window_bounds = array<i64: 5, 8>}, {pipeline_mode = #tpu.pipeline_mode<synchronous>, transform_indices = @transform_2, window_bounds = array<i64: 1, 8>}, {transform_indices = @transform_3, window_bounds = array<i64: 8, 24>}]} {
    %c0 = arith.constant 0 : index
    %c0_0 = arith.constant 0 : index
    %0 = vector.load %arg1[%c0, %c0_0] : memref<8x5xf32, #tpu.memory_space<vmem>>, vector<8x5xf32>
    %c0_1 = arith.constant 0 : index
    %c0_2 = arith.constant 0 : index
    %1 = vector.load %arg2[%c0_1, %c0_2] : memref<5x8xf32, #tpu.memory_space<vmem>>, vector<5x8xf32>
    %c0_3 = arith.constant 0 : index
    %c0_4 = arith.constant 0 : index
    %2 = vector.load %arg3[%c0_3, %c0_4] : memref<1x8xf32, #tpu.memory_space<vmem>>, vector<1x8xf32>
    %3 = vector.extract_strided_slice %0 {offsets = [0, 0], sizes = [8, 1], strides = [1, 1]} : vector<8x5xf32> to vector<8x1xf32>
    %4 = vector.extract_strided_slice %1 {offsets = [0, 0], sizes = [1, 8], strides = [1, 1]} : vector<5x8xf32> to vector<1x8xf32>
    %5 = vector.broadcast %3 : vector<8x1xf32> to vector<8x8xf32>
    %6 = vector.broadcast %4 : vector<1x8xf32> to vector<8x8xf32>
    %7 = arith.mulf %5, %6 : vector<8x8xf32>
    %8 = vector.broadcast %2 : vector<1x8xf32> to vector<8x8xf32>
    %9 = arith.addf %8, %7 : vector<8x8xf32>
    %10 = vector.extract_strided_slice %0 {offsets = [0, 1], sizes = [8, 1], strides = [1, 1]} : vector<8x5xf32> to vector<8x1xf32>
    %11 = vector.extract_strided_slice %1 {offsets = [1, 0], sizes = [1, 8], strides = [1, 1]} : vector<5x8xf32> to vector<1x8xf32>
    %12 = vector.broadcast %10 : vector<8x1xf32> to vector<8x8xf32>
    %13 = vector.broadcast %11 : vector<1x8xf32> to vector<8x8xf32>
    %14 = arith.mulf %12, %13 : vector<8x8xf32>
    %15 = arith.addf %9, %14 : vector<8x8xf32>
    %16 = vector.extract_strided_slice %0 {offsets = [0, 2], sizes = [8, 1], strides = [1, 1]} : vector<8x5xf32> to vector<8x1xf32>
    %17 = vector.extract_strided_slice %1 {offsets = [2, 0], sizes = [1, 8], strides = [1, 1]} : vector<5x8xf32> to vector<1x8xf32>
    %18 = vector.broadcast %16 : vector<8x1xf32> to vector<8x8xf32>
    %19 = vector.broadcast %17 : vector<1x8xf32> to vector<8x8xf32>
    %20 = arith.mulf %18, %19 : vector<8x8xf32>
    %21 = arith.addf %15, %20 : vector<8x8xf32>
    %22 = vector.extract_strided_slice %0 {offsets = [0, 3], sizes = [8, 1], strides = [1, 1]} : vector<8x5xf32> to vector<8x1xf32>
    %23 = vector.extract_strided_slice %1 {offsets = [3, 0], sizes = [1, 8], strides = [1, 1]} : vector<5x8xf32> to vector<1x8xf32>
    %24 = vector.broadcast %22 : vector<8x1xf32> to vector<8x8xf32>
    %25 = vector.broadcast %23 : vector<1x8xf32> to vector<8x8xf32>
    %26 = arith.mulf %24, %25 : vector<8x8xf32>
    %27 = arith.addf %21, %26 : vector<8x8xf32>
    %28 = vector.extract_strided_slice %0 {offsets = [0, 4], sizes = [8, 1], strides = [1, 1]} : vector<8x5xf32> to vector<8x1xf32>
    %29 = vector.extract_strided_slice %1 {offsets = [4, 0], sizes = [1, 8], strides = [1, 1]} : vector<5x8xf32> to vector<1x8xf32>
    %30 = vector.broadcast %28 : vector<8x1xf32> to vector<8x8xf32>
    %31 = vector.broadcast %29 : vector<1x8xf32> to vector<8x8xf32>
    %32 = arith.mulf %30, %31 : vector<8x8xf32>
    %33 = arith.addf %27, %32 : vector<8x8xf32>
    %34 = arith.negf %33 : vector<8x8xf32>
    %35 = math.exp %34 : vector<8x8xf32>
    %cst = arith.constant 1.000000e+00 : f32
    %36 = vector.broadcast %cst : f32 to vector<8x8xf32>
    %37 = arith.addf %36, %35 : vector<8x8xf32>
    %38 = arith.divf %36, %37 : vector<8x8xf32>
    %cst_5 = arith.constant 1.700000e+00 : f32
    %39 = vector.broadcast %cst_5 : f32 to vector<8x8xf32>
    %40 = arith.mulf %39, %38 : vector<8x8xf32>
    %41 = math.exp %40 : vector<8x8xf32>
    %cst_6 = arith.constant dense<0.000000e+00> : vector<8xf32>
    %42 = vector.multi_reduction <add>, %41, %cst_6 [1] : vector<8x8xf32> to vector<8xf32>
    %43 = vector.shape_cast %42 : vector<8xf32> to vector<8x1xf32>
    %44 = tpu.reciprocal %43 {approx = true} : vector<8x1xf32> -> vector<8x1xf32>
    %45 = vector.broadcast %44 : vector<8x1xf32> to vector<8x8xf32>
    %46 = arith.mulf %41, %45 : vector<8x8xf32>
    %c0_7 = arith.constant 0 : index
    %c0_8 = arith.constant 0 : index
    %47 = vector.load %arg4[%c0_7, %c0_8] : memref<8x24xf32, #tpu.memory_space<vmem>>, vector<8x8xf32>
    tpu.vector_store %arg4[%c0_7, %c0_8], %46 {strides = array<i32>} : memref<8x24xf32, #tpu.memory_space<vmem>>, vector<8x8xf32>,
    %c0_9 = arith.constant 0 : index
    %c8 = arith.constant 8 : index
    %48 = vector.load %arg4[%c0_9, %c8] : memref<8x24xf32, #tpu.memory_space<vmem>>, vector<8x8xf32>
    tpu.vector_store %arg4[%c0_9, %c8], %38 {strides = array<i32>} : memref<8x24xf32, #tpu.memory_space<vmem>>, vector<8x8xf32>,
    %c0_10 = arith.constant 0 : index
    %c16 = arith.constant 16 : index
    %49 = vector.load %arg4[%c0_10, %c16] : memref<8x24xf32, #tpu.memory_space<vmem>>, vector<8x8xf32>
    tpu.vector_store %arg4[%c0_10, %c16], %33 {strides = array<i32>} : memref<8x24xf32, #tpu.memory_space<vmem>>, vector<8x8xf32>,
    return
  }
  func.func @transform_0(%arg0: i32) -> (i32, i32) {
    %c0_i32 = arith.constant 0 : i32
    %c0_i32_0 = arith.constant 0 : i32
    return %arg0, %c0_i32 : i32, i32
  }
  func.func @transform_1(%arg0: i32) -> (i32, i32) {
    %c0_i32 = arith.constant 0 : i32
    %c0_i32_0 = arith.constant 0 : i32
    %c0_i32_1 = arith.constant 0 : i32
    return %c0_i32, %c0_i32_0 : i32, i32
  }
  func.func @transform_2(%arg0: i32) -> (i32, i32) {
    %c0_i32 = arith.constant 0 : i32
    %c0_i32_0 = arith.constant 0 : i32
    %c0_i32_1 = arith.constant 0 : i32
    return %c0_i32, %c0_i32_0 : i32, i32
  }
  func.func @transform_3(%arg0: i32) -> (i32, i32) {
    %c0_i32 = arith.constant 0 : i32
    %c0_i32_0 = arith.constant 0 : i32
    return %arg0, %c0_i32 : i32, i32
  }
}

</mosaic_0001>

<llo_original>
// kernel: tpu_custom_call.1
$region0: #{tpu_custom_call.1}
  #allocation0 [shape = 'u32[]', space=smem, size = 0x4, offset = 0x4, fixed_abs, tag = 'smem constant byte address 0x4 - core index']
  #allocation1 [shape = 'u32[144,128]{1,0:T(1,128)}', space=vmem, size = 0x12000, scoped, tag = 'internal scratch']
  %s0 = inlined_call_operand.vmem [shape: f32[16,5], index: 0, kind: input, shape index: {}]
  %s1 = inlined_call_operand.vmem [shape: f32[5,8], index: 1, kind: input, shape index: {}]
  %s2 = inlined_call_operand.vmem [shape: f32[1,8], index: 2, kind: input, shape index: {}]
  %s3 = inlined_call_operand.hbm [shape: f32[16,24], index: 3, kind: output, shape index: {}]
  %s4 = sld [smem:[#allocation0]]
  $region45: #{tpu_custom_call.1} parent=0
    _
  %s6 = ssub.s32 1, %s4
  %s7 = scalar_select 0, %s6, %s4
  $region1: #{tpu_custom_call.1} parent=0
    #allocation2 [shape = 'u8[8192]{0}', space=vmem, size = 0x2000, scoped, tag = 'output window, operand 0']
    #allocation3 [shape = 's32[2]{0}', space=sflag, size = 0x8, scoped, tag = 'scoped memory for tpu_custom_call.1']
    %8 = vsyncpa [#allocation3], 0
    %s9 = scalar_lea.sflag [#allocation3], 1
    %10 = vsyncpa %s9, 0
    loop: start=0, step=1, limit=4
    $region2: #{tpu_custom_call.1} parent=1 // loop_pre_header
      _
    $region3: #{tpu_custom_call.1} parent=1 // loop_header
      %s12 = sphi 0, %s16
      %p13 = scmp.ge.s32.totalorder %s12, 4
      %s22 = sphi 0, %s24
      %s25 = sphi 0, %s22
      %s26 = sphi 0, %s25
      %s42 = sphi 0, %s26
      %s46 = sphi 0, %s46
      %s48 = sphi 0, %s46
      %s49 = sphi 0, %s48
      %s63 = sphi 0, %s49
      %s67 = sphi 0, %s67
      %s69 = sphi 0, %s67
      %s70 = sphi 0, %s69
      %s84 = sphi 0, %s70
      %s90 = sphi 0, %s92
      %s93 = sphi 0, %s90
      %s94 = sphi 0, %s93
      %s110 = sphi 0, %s94
    $region4: #{tpu_custom_call.1} parent=1 // loop_header_branch
      %15 = sbr.rel (%p13) target = $region8
    $region5: #{tpu_custom_call.1} parent=1 // loop_body
      %s17 = ssub.s32 %s12, 1
      %s18 = ssub.s32 %s12, 2
      %s19 = sadd.s32 %s12, 1
      %s20 = ssub.s32 %s12, %s19
      %p21 = scmp.eq.s32.totalorder %s20, 0
      %s23 = sadd.s32 %s22, 1
      %s24 = scalar_select %p21, %s22, %s23
      %p27 = pneg %p21
      %p28 = scmp.eq.s32.totalorder %s12, 1
      %p29 = por %p27, %p28
      %p30 = scmp.ne.s32.totalorder %s22, %s25
      %p31 = scmp.eq.s32.totalorder %s12, 0
      %p32 = por %p30, %p31
      %p33 = scmp.ne.s32.totalorder %s22, %s25
      %p34 = scmp.eq.s32.totalorder %s17, 1
      %p35 = por %p33, %p34
      %p36 = scmp.ne.s32.totalorder %s25, %s26
      %p37 = scmp.eq.s32.totalorder %s17, 0
      %p38 = por %p36, %p37
      %p39 = scmp.ne.s32.totalorder %s25, %s26
      %p40 = scmp.eq.s32.totalorder %s18, 1
      %p41 = por %p39, %p40
      %p43 = scmp.ne.s32.totalorder %s26, %s42
      %p44 = scmp.eq.s32.totalorder %s18, 0
      %p45 = por %p43, %p44
      %s47 = sadd.s32 %s46, 1
      %p50 = scmp.eq.s32.totalorder %s12, 1
      %p51 = scmp.ne.s32.totalorder %s46, %s48
      %p52 = scmp.eq.s32.totalorder %s12, 0
      %p53 = por %p51, %p52
      %p54 = scmp.ne.s32.totalorder %s46, %s48
      %p55 = scmp.eq.s32.totalorder %s17, 1
      %p56 = por %p54, %p55
      %p57 = scmp.ne.s32.totalorder %s48, %s49
      %p58 = scmp.eq.s32.totalorder %s17, 0
      %p59 = por %p57, %p58
      %p60 = scmp.ne.s32.totalorder %s48, %s49
      %p61 = scmp.eq.s32.totalorder %s18, 1
      %p62 = por %p60, %p61
      %p64 = scmp.ne.s32.totalorder %s49, %s63
      %p65 = scmp.eq.s32.totalorder %s18, 0
      %p66 = por %p64, %p65
      %s68 = sadd.s32 %s67, 1
      %p71 = scmp.eq.s32.totalorder %s12, 1
      %p72 = scmp.ne.s32.totalorder %s67, %s69
      %p73 = scmp.eq.s32.totalorder %s12, 0
      %p74 = por %p72, %p73
      %p75 = scmp.ne.s32.totalorder %s67, %s69
      %p76 = scmp.eq.s32.totalorder %s17, 1
      %p77 = por %p75, %p76
      %p78 = scmp.ne.s32.totalorder %s69, %s70
      %p79 = scmp.eq.s32.totalorder %s17, 0
      %p80 = por %p78, %p79
      %p81 = scmp.ne.s32.totalorder %s69, %s70
      %p82 = scmp.eq.s32.totalorder %s18, 1
      %p83 = por %p81, %p82
      %p85 = scmp.ne.s32.totalorder %s70, %s84
      %p86 = scmp.eq.s32.totalorder %s18, 0
      %p87 = por %p85, %p86
      %s88 = ssub.s32 %s12, %s19
      %p89 = scmp.eq.s32.totalorder %s88, 0
      %s91 = sadd.s32 %s90, 1
      %s92 = scalar_select %p89, %s90, %s91
      %p95 = pneg %p89
      %p96 = scmp.eq.s32.totalorder %s12, 1
      %p97 = por %p95, %p96
      %p98 = scmp.ne.s32.totalorder %s90, %s93
      %p99 = scmp.eq.s32.totalorder %s12, 0
      %p100 = por %p98, %p99
      %p101 = scmp.ne.s32.totalorder %s90, %s93
      %p102 = scmp.eq.s32.totalorder %s17, 1
      %p103 = por %p101, %p102
      %p104 = scmp.ne.s32.totalorder %s93, %s94
      %p105 = scmp.eq.s32.totalorder %s17, 0
      %p106 = por %p104, %p105
      %p107 = scmp.ne.s32.totalorder %s93, %s94
      %p108 = scmp.eq.s32.totalorder %s18, 1
      %p109 = por %p107, %p108
      %p111 = scmp.ne.s32.totalorder %s94, %s110
      %p112 = scmp.eq.s32.totalorder %s18, 0
      %p113 = por %p111, %p112
      %p114 = scmp.le.s32.totalorder 1, %s12
      %p115 = scmp.lt.s32.totalorder %s12, 3
      %p116 = pnand %p114, %p115
      %p117 = pneg %p116
      // Predicated region
      $region9: #{tpu_custom_call.1} parent=5 // pred_check
        _
      $region10: #{tpu_custom_call.1} parent=5 // pred_check_branch
        %119 = sbr.rel (%p116) target = $region12
      $region11: #{tpu_custom_call.1} parent=5 // pred_region
        %s120 = ssub.s32 %s12, 1
        // Predicated region
        $region13: #{tpu_custom_call.1} parent=11 // pred_check
          %p121 = pneg %p59
        $region14: #{tpu_custom_call.1} parent=11 // pred_check_branch
          %123 = sbr.rel (%p121) target = $region16
        $region15: #{tpu_custom_call.1} parent=11 // pred_region
          _
        $region16: #{tpu_custom_call.1} parent=11 // pred_fallthru
          _
        // Predicated region
        $region17: #{tpu_custom_call.1} parent=11 // pred_check
          %p124 = pneg %p80
        $region18: #{tpu_custom_call.1} parent=11 // pred_check_branch
          %126 = sbr.rel (%p124) target = $region20
        $region19: #{tpu_custom_call.1} parent=11 // pred_region
          _
        $region20: #{tpu_custom_call.1} parent=11 // pred_fallthru
          _
      $region12: #{tpu_custom_call.1} parent=5 // pred_fallthru
        _
      %p127 = scmp.lt.s32.totalorder %s12, 2
      // Predicated region
      $region21: #{tpu_custom_call.1} parent=5 // pred_check
        %p128 = pneg %p127
      $region22: #{tpu_custom_call.1} parent=5 // pred_check_branch
        %130 = sbr.rel (%p128) target = $region24
      $region23: #{tpu_custom_call.1} parent=5 // pred_region
        // Predicated region
        $region25: #{tpu_custom_call.1} parent=23 // pred_check
          %p131 = pneg %p32
        $region26: #{tpu_custom_call.1} parent=23 // pred_check_branch
          %133 = sbr.rel (%p131) target = $region28
        $region27: #{tpu_custom_call.1} parent=23 // pred_region
          %p134 = scmp.lt.s32.totalorder %s12, 1
          %s135 = scalar_select %p134, %s12, 1
          %s136 = smul.addr %s135, 8
          %s137 = scalar_lea.vmem %s0, %s136
        $region28: #{tpu_custom_call.1} parent=23 // pred_fallthru
          _
      $region24: #{tpu_custom_call.1} parent=5 // pred_fallthru
        _
      %p138 = scmp.le.s32.totalorder 1, %s12
      %p139 = scmp.lt.s32.totalorder %s12, 3
      %p140 = pnand %p138, %p139
      %p141 = pneg %p140
      // Predicated region
      $region29: #{tpu_custom_call.1} parent=5 // pred_check
        _
      $region30: #{tpu_custom_call.1} parent=5 // pred_check_branch
        %143 = sbr.rel (%p140) target = $region32
      $region31: #{tpu_custom_call.1} parent=5 // pred_region
        %s144 = ssub.s32 %s12, 1
        %p145 = scmp.lt.s32.totalorder %s17, 1
        %s146 = scalar_select %p145, %s17, 1
        %s147 = smul.addr %s146, 8
        %s148 = scalar_lea.vmem %s0, %s147
        %p149 = pneg %p38
        %p150 = pneg %p35
        %p151 = pneg %p59
        %p152 = pneg %p56
        %p153 = pneg %p80
        %p154 = pneg %p77
        %p155 = pneg %p106
        %p156 = pneg %p103
        %s157 = sand.u32 %s93, 1
        %s158 = scalar_lea.sflag [#allocation3], %s157
        %s159 = sand.u32 %s93, 1
        %s160 = smul.addr %s159, 8
        %s161 = scalar_lea.vmem [#allocation2], %s160
        %p162 = scmp.lt.s32.totalorder %s17, 1
        %s163 = scalar_select %p162, %s17, 1
        %s164 = smul.addr %s163, 8
        %s165 = scalar_lea.vmem %s0, %s164
        %v166 = vld [vmem:[%s165] sm:$0xff]
        %v167 = vld [vmem:[%s1] sm:$0x1f]
        %v168 = vld [vmem:[%s2] sm:$0x1]
        %170 = vset.pattern.permute.xlu0 0
        %171 = vperm.xlu0 %170, %v166
        %v172 = vpop.permute.xlu0 %171
        %v174 = vlaneseq
        %v175 = vshrl.u32 %v174, 7
        %v176 = vsub.s32 0, %v175
        %v177 = vrot.slane %v167, %v176
        %v178 = vmul.f32 %v172, %v177
        %v180 = vlaneseq
        %v181 = vshrl.u32 %v180, 7
        %v182 = vsub.s32 0, %v181
        %v183 = vrot.slane %v168, %v182
        %v185 = vadd.f32 %v183, %v178
        %186 = vset.pattern.permute.xlu0 1
        %187 = vperm.xlu0 %186, %v166
        %v188 = vpop.permute.xlu0 %187
        %v190 = vlaneseq
        %v191 = vshrl.u32 %v190, 7
        %v192 = vsub.s32 1, %v191
        %v193 = vrot.slane %v167, %v192
        %v194 = vmul.f32 %v188, %v193
        %v195 = vadd.f32 %v185, %v194
        %196 = vset.pattern.permute.xlu0 2
        %197 = vperm.xlu0 %196, %v166
        %v198 = vpop.permute.xlu0 %197
        %v200 = vlaneseq
        %v201 = vshrl.u32 %v200, 7
        %v202 = vsub.s32 2, %v201
        %v203 = vrot.slane %v167, %v202
        %v204 = vmul.f32 %v198, %v203
        %v205 = vadd.f32 %v195, %v204
        %206 = vset.pattern.permute.xlu0 3
        %207 = vperm.xlu0 %206, %v166
        %v208 = vpop.permute.xlu0 %207
        %v210 = vlaneseq
        %v211 = vshrl.u32 %v210, 7
        %v212 = vsub.s32 3, %v211
        %v213 = vrot.slane %v167, %v212
        %v214 = vmul.f32 %v208, %v213
        %v215 = vadd.f32 %v205, %v214
        %216 = vset.pattern.permute.xlu0 4
        %217 = vperm.xlu0 %216, %v166
        %v218 = vpop.permute.xlu0 %217
        %v220 = vlaneseq
        %v221 = vshrl.u32 %v220, 7
        %v222 = vsub.s32 4, %v221
        %v223 = vrot.slane %v167, %v222
        %v224 = vmul.f32 %v218, %v223
        %v225 = vadd.f32 %v215, %v224
        %v226 = vxor.u32 %v225, 2147483648
        %v227 = vmul.f32 %v226, 1.442695
        %v228 = vpow.pop %v227
        %v229 = vadd.f32 %v228, 1.0
        %v230 = vrcp.pop %v229
        %v231 = vmul.f32 1.0, %v230
        %v232 = vmul.f32 %v231, 1.7
        %v233 = vmul.f32 %v232, 1.442695
        %v234 = vpow.pop %v233
        %vm235 = vcmask 64512
        %v236 = vsel %vm235, %v234, 0.0
        %237 = vadd.xlane.f32.xlu0 %v236
        %v238 = vpop.xlane.xlu0 %237
        %v239 = vrcp.pop %v238
        %v240 = vmul.f32 %v234, %v239
        %241 = vst.msk [vmem:[%s161] sm:$0xff] %vm235, %v240
        %243 = vrot.lane.b32.xlu0 %v231, 8
        %v244 = vpop.permute.xlu0 %243
        %vm246 = vcmask 130112
        %247 = vst.msk [vmem:[%s161] sm:$0xff] %vm246, %v244
        %249 = vrot.lane.b32.xlu0 %v225, 16
        %v250 = vpop.permute.xlu0 %249
        %vm252 = vcmask 195712
        %253 = vst.msk [vmem:[%s161] sm:$0xff] %vm252, %v250
        %s254 = sand.u32 %s93, 1
        %s255 = scalar_lea.sflag [#allocation3], %s254
        %s256 = sand.u32 %s93, 1
        %s257 = smul.addr %s256, 8
        %s258 = scalar_lea.vmem [#allocation2], %s257
        // Predicated region
        $region33: #{tpu_custom_call.1} parent=31 // pred_check
          %p259 = pneg %p103
        $region34: #{tpu_custom_call.1} parent=31 // pred_check_branch
          %261 = sbr.rel (%p259) target = $region36
        $region35: #{tpu_custom_call.1} parent=31 // pred_region
          %s263 = ssub.s32 128, 128
          %264 = vsyncadd %s255, %s263
          %s265 = smul.addr %s17, 128
          %s266 = scalar_lea.hbm %s3, %s265
          %s268 = sshll.u32 %s258, 4
          %s269 = int_to_ptr.vmem [resolvable:$true] %s268
          %271 = dma.vmem_to_hbm [thread:$0]  %s269, 128, %s266, %s255
        $region36: #{tpu_custom_call.1} parent=31 // pred_fallthru
          _
      $region32: #{tpu_custom_call.1} parent=5 // pred_fallthru
        _
      %p272 = scmp.le.s32.totalorder 2, %s12
      // Predicated region
      $region37: #{tpu_custom_call.1} parent=5 // pred_check
        %p273 = pneg %p272
      $region38: #{tpu_custom_call.1} parent=5 // pred_check_branch
        %275 = sbr.rel (%p273) target = $region40
      $region39: #{tpu_custom_call.1} parent=5 // pred_region
        %s276 = ssub.s32 %s12, 2
        // Predicated region
        $region41: #{tpu_custom_call.1} parent=39 // pred_check
          %p277 = pneg %p109
        $region42: #{tpu_custom_call.1} parent=39 // pred_check_branch
          %279 = sbr.rel (%p277) target = $region44
        $region43: #{tpu_custom_call.1} parent=39 // pred_region
          %s280 = sand.u32 %s94, 1
          %s281 = scalar_lea.sflag [#allocation3], %s280
          %s282 = sand.u32 %s94, 1
          %s283 = smul.addr %s282, 8
          %s284 = scalar_lea.vmem [#allocation2], %s283
          %285 = dma.done %s281, 128
        $region44: #{tpu_custom_call.1} parent=39 // pred_fallthru
          _
      $region40: #{tpu_custom_call.1} parent=5 // pred_fallthru
        _
    $region6: #{tpu_custom_call.1} parent=1 // loop_footer
      %s16 = sadd.s32 1, %s12
    $region7: #{tpu_custom_call.1} parent=1 // loop_footer_branch
      %11 = sbr.rel target = $region3
    $region8: #{tpu_custom_call.1} parent=1 // loop_exit
      _
    %286 = vsyncpa [#allocation3], 1
    %s287 = scalar_lea.sflag [#allocation3], 1
    %288 = vsyncpa %s287, 1

</llo_original>
